<compile_context>
chip_gen: v7x
topology: tpu7x:2x2x1
jax: 0.10.0
libtpu: 0.0.40
codegen_flags: <defaults>
</compile_context>

<pallas_src>
import functools

import numpy as np
import jax
import jax.numpy as jnp
from jax.experimental import pallas as pl
from jax.experimental.pallas import tpu as pltpu

CHANNEL_STRIDE = 32  # hard-coded `int(32)` in the reference torch module


def _rspool_kernel(feat_ref, bins_ref, out_ref, *, out_channels, num_bins):
    # feat_ref: (C, TN); bins_ref: (1, TN) int32 (clamped to [0, num_bins));
    # out_ref: (out_channels, TN)
    bins = bins_ref[...]                        # stays a single (1, TN) sublane row
    # Leaves: contiguous channel blocks, one per orientation bin, padded to the
    # next power of two.  Padded leaves can never win the select because the
    # clamped bin index is always < num_bins.
    n_leaves = 1
    while n_leaves < num_bins:
        n_leaves *= 2
    level = [
        feat_ref[pl.ds(min(o, num_bins - 1) * CHANNEL_STRIDE, out_channels), :]
        for o in range(n_leaves)
    ]
    bit = 0
    while len(level) > 1:
        # (1, TN) bool mask; jnp.where broadcasts it across sublanes — no
        # materialized (out_channels, TN) int32 bins tensor, no accumulator.
        take_hi = (bins & (1 << bit)) != 0
        level = [
            jnp.where(take_hi, level[2 * i + 1], level[2 * i])
            for i in range(len(level) // 2)
        ]
        bit += 1
    out_ref[...] = level[0]


def _vmem_capacity_bytes():
    try:
        return int(pltpu.get_tpu_info().vmem_capacity_bytes)
    except Exception:
        return 64 * 1024 * 1024  # conservative fallback: v7x per-TensorCore VMEM


def _choose_tile_n(n_pad, per_tile_bytes, cap_tn, budget_bytes):
    """Largest lane-dense (multiple-of-128) tile dividing padded N that fits
    the double-buffered VMEM budget."""
    for tn in (8192, 4096, 2048, 1024, 512, 256, 128):
        if tn > cap_tn or n_pad % tn:
            continue
        if 2 * per_tile_bytes(tn) <= budget_bytes:
            return tn
    return 128


def rspool(feats, rois, orientation=8):
    """feats: (L, C, H, W); rois: (L, N, >=5) with N == H*W, angle at [..., 4]."""
    L, C, H, W = feats.shape
    N = H * W
    assert rois.shape[0] == L and rois.shape[1] == N
    out_channels = C // orientation
    # Number of orientation blocks the channel axis can actually hold (the
    # torch gather would OOB-index past this; we clamp the bin index instead).
    num_bins = (C - out_channels) // CHANNEL_STRIDE + 1

    itemsize = jnp.dtype(feats.dtype).itemsize
    N_pad = ((N + 127) // 128) * 128            # lane-dense padding

    vmem_cap = _vmem_capacity_bytes()
    cap_tn = 8192 if vmem_cap >= 128 * 1024 * 1024 else 4096   # v5e/v6e vs v7x
    budget = min(24 * 1024 * 1024, vmem_cap // 2 - 4 * 1024 * 1024)
    per_tile = lambda tn: tn * (itemsize * (C + out_channels) + 4)  # feat+out+bins
    TN = _choose_tile_n(N_pad, per_tile, cap_tn, budget)
    n_tiles = N_pad // TN

    feat2d = feats.reshape(L, C, N)
    # Precompute + clamp orientation bins outside the kernel (tiny XLA op).
    ang = rois[:, :, 4].astype(jnp.float32)
    bins = jnp.floor((ang + jnp.pi / 4.0) / (jnp.pi / 8.0)).astype(jnp.int32)
    bins = jnp.clip(bins, 0, num_bins - 1).reshape(L, 1, N)
    if N_pad != N:
        feat2d = jnp.pad(feat2d, ((0, 0), (0, 0), (0, N_pad - N)))
        bins = jnp.pad(bins, ((0, 0), (0, 0), (0, N_pad - N)))

    kernel = functools.partial(
        _rspool_kernel, out_channels=out_channels, num_bins=num_bins)

    # Double-buffered blocks + fixed margin, capped <= 32 MiB (v7x-safe).
    vmem_limit = int(min(max(2 * per_tile(TN) + 4 * 1024 * 1024,
                             16 * 1024 * 1024),
                         32 * 1024 * 1024))

    out = pl.pallas_call(
        kernel,
        out_shape=jax.ShapeDtypeStruct((L, out_channels, N_pad), feats.dtype),
        grid_spec=pltpu.PrefetchScalarGridSpec(
            num_scalar_prefetch=0,
            grid=(L, n_tiles),
            in_specs=[
                pl.BlockSpec((None, C, TN), lambda l, n: (l, 0, n)),
                pl.BlockSpec((None, 1, TN), lambda l, n: (l, 0, n)),
            ],
            out_specs=pl.BlockSpec((None, out_channels, TN),
                                   lambda l, n: (l, 0, n)),
        ),
        compiler_params=pltpu.CompilerParams(
            dimension_semantics=("parallel", "parallel"),
            vmem_limit_bytes=vmem_limit,
        ),
    )(feat2d, bins)

    if N_pad != N:
        out = out[:, :, :N]
    return out.reshape(L, out_channels, H, W)


def rspool_ref(feats, rois, out_channels):
    """Pure numpy mirror of the torch forward (for verification)."""
    outs = []
    for feat, roi in zip(feats, rois):
        h, w = feat.shape[1], feat.shape[2]
        a = roi[:, 4].astype(np.float32) + np.float32(np.pi / 4)
        a = (np.floor(a / np.float32(np.pi / 8)).astype(np.int64) * 32).reshape(-1, 1)
        n = a.shape[0]
        bias = np.arange(out_channels, dtype=np.int64)
        index = np.tile(np.arange(n, dtype=np.int64).reshape(-1, 1),
                        (1, out_channels)).reshape(-1)
        j = (a + bias).reshape(-1)
        feat_r = feat.reshape(-1, n).T            # (n, C)
        aligned = feat_r[index, j]
        outs.append(aligned.reshape(n, -1).T.reshape(-1, h, w))
    return np.stack(outs, axis=0)


if __name__ == "__main__":
    key = jax.random.PRNGKey(0)
    k1, k2, k3, k4 = jax.random.split(key, 4)

    # Shapes consistent with the module's hard-coded channel stride of 32:
    # in_channels=256, orientation=8 -> out_channels=32; N rois per level = H*W.
    L, C, orientation = 2, 256, 8
    out_channels = C // orientation

    # Case 1: H*W already a multiple of 128 (lane-dense, no padding).
    H, W = 16, 16
    N = H * W
    feats = jax.random.normal(k1, (L, C, H, W), dtype=jnp.float32)
    angles = jax.random.uniform(
        k2, (L, N), dtype=jnp.float32,
        minval=-jnp.pi / 4 + 1e-3, maxval=3 * jnp.pi / 4 - 1e-3)
    rois = jnp.concatenate(
        [jnp.zeros((L, N, 4), jnp.float32), angles[..., None]], axis=-1)
    out = jax.block_until_ready(rspool(feats, rois, orientation=orientation))
    ref = rspool_ref(np.asarray(feats), np.asarray(rois), out_channels)
    assert out.shape == ref.shape, (out.shape, ref.shape)
    np.testing.assert_allclose(np.asarray(out), ref, rtol=0, atol=0)

    # Case 2: ragged spatial extent (15x15 = 225) -> exercises the pad/slice path.
    H, W = 15, 15
    N = H * W
    feats = jax.random.normal(k3, (L, C, H, W), dtype=jnp.float32)
    angles = jax.random.uniform(
        k4, (L, N), dtype=jnp.float32,
        minval=-jnp.pi / 4 + 1e-3, maxval=3 * jnp.pi / 4 - 1e-3)
    rois = jnp.concatenate(
        [jnp.zeros((L, N, 4), jnp.float32), angles[..., None]], axis=-1)
    out = jax.block_until_ready(rspool(feats, rois, orientation=orientation))
    ref = rspool_ref(np.asarray(feats), np.asarray(rois), out_channels)
    assert out.shape == ref.shape, (out.shape, ref.shape)
    np.testing.assert_allclose(np.asarray(out), ref, rtol=0, atol=0)

    print("KERNEL_OK")
</pallas_src>

<mosaic_0001>
module attributes {stable_mosaic.version = 11 : i64} {
  func.func @_rspool_kernel(%arg0: i32, %arg1: i32, %arg2: memref<1x256x256xf32, #tpu.memory_space<vmem>>, %arg3: memref<1x1x256xi32, #tpu.memory_space<vmem>>, %arg4: memref<1x32x256xf32, #tpu.memory_space<vmem>>) attributes {dimension_semantics = [#tpu.dimension_semantics<parallel>, #tpu.dimension_semantics<parallel>], iteration_bounds = array<i64: 2, 1>, scalar_prefetch = 0 : i64, scratch_operands = 0 : i64, tpu.core_type = #tpu.core_type<tc>, window_params = [{transform_indices = @transform_0, window_bounds = array<i64: 1, 256, 256>}, {transform_indices = @transform_1, window_bounds = array<i64: 1, 1, 256>}, {transform_indices = @transform_2, window_bounds = array<i64: 1, 32, 256>}]} {
    %c0 = arith.constant 0 : index
    %c0_0 = arith.constant 0 : index
    %c0_1 = arith.constant 0 : index
    %0 = vector.load %arg3[%c0, %c0_0, %c0_1] : memref<1x1x256xi32, #tpu.memory_space<vmem>>, vector<1x1x256xi32>
    %1 = vector.shape_cast %0 : vector<1x1x256xi32> to vector<1x256xi32>
    %c0_2 = arith.constant 0 : index
    %c0_3 = arith.constant 0 : index
    %c0_4 = arith.constant 0 : index
    %2 = vector.load %arg2[%c0_2, %c0_3, %c0_4] : memref<1x256x256xf32, #tpu.memory_space<vmem>>, vector<1x32x256xf32>
    %3 = vector.shape_cast %2 : vector<1x32x256xf32> to vector<32x256xf32>
    %c0_5 = arith.constant 0 : index
    %c32 = arith.constant 32 : index
    %c0_6 = arith.constant 0 : index
    %4 = vector.load %arg2[%c0_5, %c32, %c0_6] : memref<1x256x256xf32, #tpu.memory_space<vmem>>, vector<1x32x256xf32>
    %5 = vector.shape_cast %4 : vector<1x32x256xf32> to vector<32x256xf32>
    %c0_7 = arith.constant 0 : index
    %c64 = arith.constant 64 : index
    %c0_8 = arith.constant 0 : index
    %6 = vector.load %arg2[%c0_7, %c64, %c0_8] : memref<1x256x256xf32, #tpu.memory_space<vmem>>, vector<1x32x256xf32>
    %7 = vector.shape_cast %6 : vector<1x32x256xf32> to vector<32x256xf32>
    %c0_9 = arith.constant 0 : index
    %c96 = arith.constant 96 : index
    %c0_10 = arith.constant 0 : index
    %8 = vector.load %arg2[%c0_9, %c96, %c0_10] : memref<1x256x256xf32, #tpu.memory_space<vmem>>, vector<1x32x256xf32>
    %9 = vector.shape_cast %8 : vector<1x32x256xf32> to vector<32x256xf32>
    %c0_11 = arith.constant 0 : index
    %c128 = arith.constant 128 : index
    %c0_12 = arith.constant 0 : index
    %10 = vector.load %arg2[%c0_11, %c128, %c0_12] : memref<1x256x256xf32, #tpu.memory_space<vmem>>, vector<1x32x256xf32>
    %11 = vector.shape_cast %10 : vector<1x32x256xf32> to vector<32x256xf32>
    %c0_13 = arith.constant 0 : index
    %c160 = arith.constant 160 : index
    %c0_14 = arith.constant 0 : index
    %12 = vector.load %arg2[%c0_13, %c160, %c0_14] : memref<1x256x256xf32, #tpu.memory_space<vmem>>, vector<1x32x256xf32>
    %13 = vector.shape_cast %12 : vector<1x32x256xf32> to vector<32x256xf32>
    %c0_15 = arith.constant 0 : index
    %c192 = arith.constant 192 : index
    %c0_16 = arith.constant 0 : index
    %14 = vector.load %arg2[%c0_15, %c192, %c0_16] : memref<1x256x256xf32, #tpu.memory_space<vmem>>, vector<1x32x256xf32>
    %15 = vector.shape_cast %14 : vector<1x32x256xf32> to vector<32x256xf32>
    %c0_17 = arith.constant 0 : index
    %c224 = arith.constant 224 : index
    %c0_18 = arith.constant 0 : index
    %16 = vector.load %arg2[%c0_17, %c224, %c0_18] : memref<1x256x256xf32, #tpu.memory_space<vmem>>, vector<1x32x256xf32>
    %17 = vector.shape_cast %16 : vector<1x32x256xf32> to vector<32x256xf32>
    %c1_i32 = arith.constant 1 : i32
    %18 = vector.broadcast %c1_i32 : i32 to vector<1x256xi32>
    %19 = arith.andi %1, %18 : vector<1x256xi32>
    %c0_i32 = arith.constant 0 : i32
    %20 = vector.broadcast %c0_i32 : i32 to vector<1x256xi32>
    %21 = arith.cmpi ne, %19, %20 : vector<1x256xi32>
    %22 = vector.shape_cast %21 : vector<1x256xi1> to vector<1x256xi1>
    %23 = vector.broadcast %22 : vector<1x256xi1> to vector<32x256xi1>
    %24 = arith.select %23, %5, %3 : vector<32x256xi1>, vector<32x256xf32>
    %25 = vector.shape_cast %21 : vector<1x256xi1> to vector<1x256xi1>
    %26 = vector.broadcast %25 : vector<1x256xi1> to vector<32x256xi1>
    %27 = arith.select %26, %9, %7 : vector<32x256xi1>, vector<32x256xf32>
    %28 = vector.shape_cast %21 : vector<1x256xi1> to vector<1x256xi1>
    %29 = vector.broadcast %28 : vector<1x256xi1> to vector<32x256xi1>
    %30 = arith.select %29, %13, %11 : vector<32x256xi1>, vector<32x256xf32>
    %31 = vector.shape_cast %21 : vector<1x256xi1> to vector<1x256xi1>
    %32 = vector.broadcast %31 : vector<1x256xi1> to vector<32x256xi1>
    %33 = arith.select %32, %17, %15 : vector<32x256xi1>, vector<32x256xf32>
    %c2_i32 = arith.constant 2 : i32
    %34 = vector.broadcast %c2_i32 : i32 to vector<1x256xi32>
    %35 = arith.andi %1, %34 : vector<1x256xi32>
    %c0_i32_19 = arith.constant 0 : i32
    %36 = vector.broadcast %c0_i32_19 : i32 to vector<1x256xi32>
    %37 = arith.cmpi ne, %35, %36 : vector<1x256xi32>
    %38 = vector.shape_cast %37 : vector<1x256xi1> to vector<1x256xi1>
    %39 = vector.broadcast %38 : vector<1x256xi1> to vector<32x256xi1>
    %40 = arith.select %39, %27, %24 : vector<32x256xi1>, vector<32x256xf32>
    %41 = vector.shape_cast %37 : vector<1x256xi1> to vector<1x256xi1>
    %42 = vector.broadcast %41 : vector<1x256xi1> to vector<32x256xi1>
    %43 = arith.select %42, %33, %30 : vector<32x256xi1>, vector<32x256xf32>
    %c4_i32 = arith.constant 4 : i32
    %44 = vector.broadcast %c4_i32 : i32 to vector<1x256xi32>
    %45 = arith.andi %1, %44 : vector<1x256xi32>
    %c0_i32_20 = arith.constant 0 : i32
    %46 = vector.broadcast %c0_i32_20 : i32 to vector<1x256xi32>
    %47 = arith.cmpi ne, %45, %46 : vector<1x256xi32>
    %48 = vector.shape_cast %47 : vector<1x256xi1> to vector<1x256xi1>
    %49 = vector.broadcast %48 : vector<1x256xi1> to vector<32x256xi1>
    %50 = arith.select %49, %43, %40 : vector<32x256xi1>, vector<32x256xf32>
    %c0_21 = arith.constant 0 : index
    %c0_22 = arith.constant 0 : index
    %c0_23 = arith.constant 0 : index
    %51 = vector.load %arg4[%c0_21, %c0_22, %c0_23] : memref<1x32x256xf32, #tpu.memory_space<vmem>>, vector<1x32x256xf32>
    %52 = vector.shape_cast %51 : vector<1x32x256xf32> to vector<32x256xf32>
    %53 = vector.shape_cast %50 : vector<32x256xf32> to vector<1x32x256xf32>
    tpu.vector_store %arg4[%c0_21, %c0_22, %c0_23], %53 {strides = array<i32>} : memref<1x32x256xf32, #tpu.memory_space<vmem>>, vector<1x32x256xf32>,
    return
  }
  func.func @transform_0(%arg0: i32, %arg1: i32) -> (i32, i32, i32) {
    %c0_i32 = arith.constant 0 : i32
    %c0_i32_0 = arith.constant 0 : i32
    return %arg0, %c0_i32, %arg1 : i32, i32, i32
  }
  func.func @transform_1(%arg0: i32, %arg1: i32) -> (i32, i32, i32) {
    %c0_i32 = arith.constant 0 : i32
    %c0_i32_0 = arith.constant 0 : i32
    return %arg0, %c0_i32, %arg1 : i32, i32, i32
  }
  func.func @transform_2(%arg0: i32, %arg1: i32) -> (i32, i32, i32) {
    %c0_i32 = arith.constant 0 : i32
    %c0_i32_0 = arith.constant 0 : i32
    return %arg0, %c0_i32, %arg1 : i32, i32, i32
  }
}

</mosaic_0001>

<llo_original>
// kernel: tpu_custom_call.1
$region0: #{tpu_custom_call.1}
  #allocation0 [shape = 'u32[]', space=smem, size = 0x4, offset = 0x4, fixed_abs, tag = 'smem constant byte address 0x4 - core index']
  #allocation1 [shape = 'u32[144,128]{1,0:T(1,128)}', space=vmem, size = 0x12000, scoped, tag = 'internal scratch']
  %s0 = inlined_call_operand.hbm [shape: f32[2,256,256], index: 0, kind: input, shape index: {}]
  %s1 = inlined_call_operand.hbm [shape: s32[2,1,256], index: 1, kind: input, shape index: {}]
  %s2 = inlined_call_operand.hbm [shape: f32[2,32,256], index: 2, kind: output, shape index: {}]
  %s3 = sld [smem:[#allocation0]]
  $region49: #{tpu_custom_call.1} parent=0
    _
  %s5 = ssub.s32 1, %s3
  %s6 = scalar_select 0, %s5, %s3
  $region1: #{tpu_custom_call.1} parent=0
    #allocation2 [shape = 'u8[524288]{0}', space=vmem, size = 0x80000, scoped, tag = 'input window, operand 0']
    #allocation3 [shape = 's32[2]{0}', space=sflag, size = 0x8, scoped, tag = 'scoped memory for tpu_custom_call.1']
    #allocation4 [shape = 's32[2]{0}', space=sflag, size = 0x8, scoped, tag = 'scoped memory for tpu_custom_call.1']
    #allocation5 [shape = 'u8[2048]{0}', space=vmem, size = 0x800, scoped, tag = 'input window, operand 1']
    #allocation6 [shape = 's32[2]{0}', space=sflag, size = 0x8, scoped, tag = 'scoped memory for tpu_custom_call.1']
    #allocation7 [shape = 'u8[65536]{0}', space=vmem, size = 0x10000, scoped, tag = 'output window, operand 0']
    %7 = vsyncpa [#allocation3], 0
    %s8 = scalar_lea.sflag [#allocation3], 1
    %9 = vsyncpa %s8, 0
    %10 = vsyncpa [#allocation6], 0
    %s11 = scalar_lea.sflag [#allocation6], 1
    %12 = vsyncpa %s11, 0
    %13 = vsyncpa [#allocation4], 0
    %s14 = scalar_lea.sflag [#allocation4], 1
    %15 = vsyncpa %s14, 0
    loop: start=0, step=1, limit=4
    $region2: #{tpu_custom_call.1} parent=1 // loop_pre_header
      _
    $region3: #{tpu_custom_call.1} parent=1 // loop_header
      %s17 = sphi 0, %s21
      %p18 = scmp.ge.s32.totalorder %s17, 4
      %s24 = sphi 0, %s36
      %s25 = sphi 0, %s32
      %s26 = sphi 0, %s24
      %s27 = sphi 0, %s25
      %s28 = sphi 0, %s26
      %s29 = sphi 0, %s27
      %s41 = sphi 0, %s43
      %s44 = sphi 0, %s41
      %s45 = sphi 0, %s44
      %s61 = sphi 0, %s45
      %s69 = sphi 0, %s71
      %s72 = sphi 0, %s69
      %s73 = sphi 0, %s72
      %s89 = sphi 0, %s73
      %s97 = sphi 0, %s99
      %s100 = sphi 0, %s97
      %s101 = sphi 0, %s100
      %s117 = sphi 0, %s101
    $region4: #{tpu_custom_call.1} parent=1 // loop_header_branch
      %20 = sbr.rel (%p18) target = $region8
    $region5: #{tpu_custom_call.1} parent=1 // loop_body
      %s22 = ssub.s32 %s17, 1
      %s23 = ssub.s32 %s17, 2
      %s30 = sadd.s32 1, %s25
      %p31 = scmp.ge.s32.totalorder %s30, 1
      %s32 = scalar_select %p31, 0, %s30
      %s33 = sadd.s32 1, %s24
      %s34 = scalar_select %p31, %s33, %s24
      %p35 = scmp.ge.s32.totalorder %s34, 2
      %s36 = scalar_select %p35, 0, %s34
      %s37 = ssub.s32 %s24, %s36
      %s38 = ssub.s32 %s25, %s32
      %s39 = sor.u32 %s37, %s38
      %p40 = scmp.eq.s32.totalorder %s39, 0
      %s42 = sadd.s32 %s41, 1
      %s43 = scalar_select %p40, %s41, %s42
      %p46 = pneg %p40
      %p47 = scmp.eq.s32.totalorder %s17, 1
      %p48 = por %p46, %p47
      %p49 = scmp.ne.s32.totalorder %s41, %s44
      %p50 = scmp.eq.s32.totalorder %s17, 0
      %p51 = por %p49, %p50
      %p52 = scmp.ne.s32.totalorder %s41, %s44
      %p53 = scmp.eq.s32.totalorder %s22, 1
      %p54 = por %p52, %p53
      %p55 = scmp.ne.s32.totalorder %s44, %s45
      %p56 = scmp.eq.s32.totalorder %s22, 0
      %p57 = por %p55, %p56
      %p58 = scmp.ne.s32.totalorder %s44, %s45
      %p59 = scmp.eq.s32.totalorder %s23, 1
      %p60 = por %p58, %p59
      %p62 = scmp.ne.s32.totalorder %s45, %s61
      %p63 = scmp.eq.s32.totalorder %s23, 0
      %p64 = por %p62, %p63
      %s65 = ssub.s32 %s24, %s36
      %s66 = ssub.s32 %s25, %s32
      %s67 = sor.u32 %s65, %s66
      %p68 = scmp.eq.s32.totalorder %s67, 0
      %s70 = sadd.s32 %s69, 1
      %s71 = scalar_select %p68, %s69, %s70
      %p74 = pneg %p68
      %p75 = scmp.eq.s32.totalorder %s17, 1
      %p76 = por %p74, %p75
      %p77 = scmp.ne.s32.totalorder %s69, %s72
      %p78 = scmp.eq.s32.totalorder %s17, 0
      %p79 = por %p77, %p78
      %p80 = scmp.ne.s32.totalorder %s69, %s72
      %p81 = scmp.eq.s32.totalorder %s22, 1
      %p82 = por %p80, %p81
      %p83 = scmp.ne.s32.totalorder %s72, %s73
      %p84 = scmp.eq.s32.totalorder %s22, 0
      %p85 = por %p83, %p84
      %p86 = scmp.ne.s32.totalorder %s72, %s73
      %p87 = scmp.eq.s32.totalorder %s23, 1
      %p88 = por %p86, %p87
      %p90 = scmp.ne.s32.totalorder %s73, %s89
      %p91 = scmp.eq.s32.totalorder %s23, 0
      %p92 = por %p90, %p91
      %s93 = ssub.s32 %s24, %s36
      %s94 = ssub.s32 %s25, %s32
      %s95 = sor.u32 %s93, %s94
      %p96 = scmp.eq.s32.totalorder %s95, 0
      %s98 = sadd.s32 %s97, 1
      %s99 = scalar_select %p96, %s97, %s98
      %p102 = pneg %p96
      %p103 = scmp.eq.s32.totalorder %s17, 1
      %p104 = por %p102, %p103
      %p105 = scmp.ne.s32.totalorder %s97, %s100
      %p106 = scmp.eq.s32.totalorder %s17, 0
      %p107 = por %p105, %p106
      %p108 = scmp.ne.s32.totalorder %s97, %s100
      %p109 = scmp.eq.s32.totalorder %s22, 1
      %p110 = por %p108, %p109
      %p111 = scmp.ne.s32.totalorder %s100, %s101
      %p112 = scmp.eq.s32.totalorder %s22, 0
      %p113 = por %p111, %p112
      %p114 = scmp.ne.s32.totalorder %s100, %s101
      %p115 = scmp.eq.s32.totalorder %s23, 1
      %p116 = por %p114, %p115
      %p118 = scmp.ne.s32.totalorder %s101, %s117
      %p119 = scmp.eq.s32.totalorder %s23, 0
      %p120 = por %p118, %p119
      %p121 = scmp.le.s32.totalorder 1, %s17
      %p122 = scmp.lt.s32.totalorder %s17, 3
      %p123 = pnand %p121, %p122
      %p124 = pneg %p123
      // Predicated region
      $region9: #{tpu_custom_call.1} parent=5 // pred_check
        _
      $region10: #{tpu_custom_call.1} parent=5 // pred_check_branch
        %126 = sbr.rel (%p123) target = $region12
      $region11: #{tpu_custom_call.1} parent=5 // pred_region
        %s127 = ssub.s32 %s17, 1
      $region12: #{tpu_custom_call.1} parent=5 // pred_fallthru
        _
      %p128 = scmp.lt.s32.totalorder %s17, 2
      // Predicated region
      $region13: #{tpu_custom_call.1} parent=5 // pred_check
        %p129 = pneg %p128
      $region14: #{tpu_custom_call.1} parent=5 // pred_check_branch
        %131 = sbr.rel (%p129) target = $region16
      $region15: #{tpu_custom_call.1} parent=5 // pred_region
        // Predicated region
        $region17: #{tpu_custom_call.1} parent=15 // pred_check
          %p132 = pneg %p51
        $region18: #{tpu_custom_call.1} parent=15 // pred_check_branch
          %134 = sbr.rel (%p132) target = $region20
        $region19: #{tpu_custom_call.1} parent=15 // pred_region
          %s135 = sand.u32 %s41, 1
          %s136 = scalar_lea.sflag [#allocation3], %s135
          %s137 = sand.u32 %s41, 1
          %s138 = smul.addr %s137, 512
          %s139 = scalar_lea.vmem [#allocation2], %s138
          %s140 = smul.u32 2, %s25
          %s142 = ssub.s32 8192, 8192
          %143 = vsyncadd %s136, %s142
          %s144 = smul.addr %s24, 64
          %s145 = sadd.s32 %s140, %s144
          %s146 = smul.addr %s145, 128
          %s147 = scalar_lea.hbm %s0, %s146
          %s148 = sshll.u32 %s139, 4
          %s149 = int_to_ptr.vmem [resolvable:$true] %s148
          %154 = dma.hbm_to_vmem [thread:$0]  %s147, 8192, %s149, %s136, 256, 256, 16
        $region20: #{tpu_custom_call.1} parent=15 // pred_fallthru
          _
        // Predicated region
        $region21: #{tpu_custom_call.1} parent=15 // pred_check
          %p155 = pneg %p79
        $region22: #{tpu_custom_call.1} parent=15 // pred_check_branch
          %157 = sbr.rel (%p155) target = $region24
        $region23: #{tpu_custom_call.1} parent=15 // pred_region
          %s158 = sand.u32 %s69, 1
          %s159 = scalar_lea.sflag [#allocation6], %s158
          %s160 = sand.u32 %s69, 1
          %s161 = smul.addr %s160, 2
          %s162 = scalar_lea.vmem [#allocation5], %s161
          %s163 = smul.u32 2, %s25
          %s165 = ssub.s32 32, 32
          %166 = vsyncadd %s159, %s165
          %s167 = smul.addr %s24, 2
          %s168 = sadd.s32 %s163, %s167
          %s169 = smul.addr %s168, 16
          %s170 = scalar_lea.hbm %s1, %s169
          %s172 = sshll.u32 %s162, 4
          %s173 = int_to_ptr.vmem [resolvable:$true] %s172
          %175 = dma.hbm_to_vmem [thread:$0]  %s170, 32, %s173, %s159
        $region24: #{tpu_custom_call.1} parent=15 // pred_fallthru
          _
      $region16: #{tpu_custom_call.1} parent=5 // pred_fallthru
        _
      %p176 = scmp.le.s32.totalorder 1, %s17
      %p177 = scmp.lt.s32.totalorder %s17, 3
      %p178 = pnand %p176, %p177
      %p179 = pneg %p178
      // Predicated region
      $region25: #{tpu_custom_call.1} parent=5 // pred_check
        _
      $region26: #{tpu_custom_call.1} parent=5 // pred_check_branch
        %181 = sbr.rel (%p178) target = $region28
      $region27: #{tpu_custom_call.1} parent=5 // pred_region
        %s182 = ssub.s32 %s17, 1
        %s183 = sand.u32 %s44, 1
        %s184 = scalar_lea.sflag [#allocation3], %s183
        %s185 = sand.u32 %s44, 1
        %s186 = smul.addr %s185, 512
        %s187 = scalar_lea.vmem [#allocation2], %s186
        // Predicated region
        $region29: #{tpu_custom_call.1} parent=27 // pred_check
          %p188 = pneg %p57
        $region30: #{tpu_custom_call.1} parent=27 // pred_check_branch
          %190 = sbr.rel (%p188) target = $region32
        $region31: #{tpu_custom_call.1} parent=27 // pred_region
          %191 = dma.done %s184, 8192
        $region32: #{tpu_custom_call.1} parent=27 // pred_fallthru
          _
        %s192 = sand.u32 %s72, 1
        %s193 = scalar_lea.sflag [#allocation6], %s192
        %s194 = sand.u32 %s72, 1
        %s195 = smul.addr %s194, 2
        %s196 = scalar_lea.vmem [#allocation5], %s195
        // Predicated region
        $region33: #{tpu_custom_call.1} parent=27 // pred_check
          %p197 = pneg %p85
        $region34: #{tpu_custom_call.1} parent=27 // pred_check_branch
          %199 = sbr.rel (%p197) target = $region36
        $region35: #{tpu_custom_call.1} parent=27 // pred_region
          %200 = dma.done %s193, 32
        $region36: #{tpu_custom_call.1} parent=27 // pred_fallthru
          _
        %s201 = sand.u32 %s44, 1
        %s202 = scalar_lea.sflag [#allocation3], %s201
        %s203 = sand.u32 %s44, 1
        %s204 = smul.addr %s203, 512
        %s205 = scalar_lea.vmem [#allocation2], %s204
        %p206 = pneg %p57
        %p207 = pneg %p54
        %s208 = sand.u32 %s72, 1
        %s209 = scalar_lea.sflag [#allocation6], %s208
        %s210 = sand.u32 %s72, 1
        %s211 = smul.addr %s210, 2
        %s212 = scalar_lea.vmem [#allocation5], %s211
        %p213 = pneg %p85
        %p214 = pneg %p82
        %p215 = pneg %p113
        %p216 = pneg %p110
        %s217 = sand.u32 %s100, 1
        %s218 = scalar_lea.sflag [#allocation4], %s217
        %s219 = sand.u32 %s100, 1
        %s220 = smul.addr %s219, 64
        %s221 = scalar_lea.vmem [#allocation7], %s220
        %s222 = smul.u32 2, %s27
        %s223 = smul.u32 2, %s27
        %s224 = smul.u32 2, %s27
        %v225 = vld [vmem:[%s196] sm:$0x3]
        %v226 = vld [vmem:[%s187] sm:$0xff]
        %v227 = vld [vmem:[%s187 + $0x8] sm:$0xff]
        %v228 = vld [vmem:[%s187 + $0x10] sm:$0xff]
        %v229 = vld [vmem:[%s187 + $0x18] sm:$0xff]
        %v230 = vld [vmem:[%s187 + $0x20] sm:$0xff]
        %v231 = vld [vmem:[%s187 + $0x28] sm:$0xff]
        %v232 = vld [vmem:[%s187 + $0x30] sm:$0xff]
        %v233 = vld [vmem:[%s187 + $0x38] sm:$0xff]
        %v234 = vld [vmem:[%s187 + $0x40] sm:$0xff]
        %v235 = vld [vmem:[%s187 + $0x48] sm:$0xff]
        %v236 = vld [vmem:[%s187 + $0x50] sm:$0xff]
        %v237 = vld [vmem:[%s187 + $0x58] sm:$0xff]
        %v238 = vld [vmem:[%s187 + $0x60] sm:$0xff]
        %v239 = vld [vmem:[%s187 + $0x68] sm:$0xff]
        %v240 = vld [vmem:[%s187 + $0x70] sm:$0xff]
        %v241 = vld [vmem:[%s187 + $0x78] sm:$0xff]
        %v242 = vld [vmem:[%s187 + $0x80] sm:$0xff]
        %v243 = vld [vmem:[%s187 + $0x88] sm:$0xff]
        %v244 = vld [vmem:[%s187 + $0x90] sm:$0xff]
        %v245 = vld [vmem:[%s187 + $0x98] sm:$0xff]
        %v246 = vld [vmem:[%s187 + $0xa0] sm:$0xff]
        %v247 = vld [vmem:[%s187 + $0xa8] sm:$0xff]
        %v248 = vld [vmem:[%s187 + $0xb0] sm:$0xff]
        %v249 = vld [vmem:[%s187 + $0xb8] sm:$0xff]
        %v250 = vld [vmem:[%s187 + $0xc0] sm:$0xff]
        %v251 = vld [vmem:[%s187 + $0xc8] sm:$0xff]
        %v252 = vld [vmem:[%s187 + $0xd0] sm:$0xff]
        %v253 = vld [vmem:[%s187 + $0xd8] sm:$0xff]
        %v254 = vld [vmem:[%s187 + $0xe0] sm:$0xff]
        %v255 = vld [vmem:[%s187 + $0xe8] sm:$0xff]
        %v256 = vld [vmem:[%s187 + $0xf0] sm:$0xff]
        %v257 = vld [vmem:[%s187 + $0xf8] sm:$0xff]
        %v258 = vld [vmem:[%s187 + $0x100] sm:$0xff]
        %v259 = vld [vmem:[%s187 + $0x108] sm:$0xff]
        %v260 = vld [vmem:[%s187 + $0x110] sm:$0xff]
        %v261 = vld [vmem:[%s187 + $0x118] sm:$0xff]
        %v262 = vld [vmem:[%s187 + $0x120] sm:$0xff]
        %v263 = vld [vmem:[%s187 + $0x128] sm:$0xff]
        %v264 = vld [vmem:[%s187 + $0x130] sm:$0xff]
        %v265 = vld [vmem:[%s187 + $0x138] sm:$0xff]
        %v266 = vld [vmem:[%s187 + $0x140] sm:$0xff]
        %v267 = vld [vmem:[%s187 + $0x148] sm:$0xff]
        %v268 = vld [vmem:[%s187 + $0x150] sm:$0xff]
        %v269 = vld [vmem:[%s187 + $0x158] sm:$0xff]
        %v270 = vld [vmem:[%s187 + $0x160] sm:$0xff]
        %v271 = vld [vmem:[%s187 + $0x168] sm:$0xff]
        %v272 = vld [vmem:[%s187 + $0x170] sm:$0xff]
        %v273 = vld [vmem:[%s187 + $0x178] sm:$0xff]
        %v274 = vld [vmem:[%s187 + $0x180] sm:$0xff]
        %v275 = vld [vmem:[%s187 + $0x188] sm:$0xff]
        %v276 = vld [vmem:[%s187 + $0x190] sm:$0xff]
        %v277 = vld [vmem:[%s187 + $0x198] sm:$0xff]
        %v278 = vld [vmem:[%s187 + $0x1a0] sm:$0xff]
        %v279 = vld [vmem:[%s187 + $0x1a8] sm:$0xff]
        %v280 = vld [vmem:[%s187 + $0x1b0] sm:$0xff]
        %v281 = vld [vmem:[%s187 + $0x1b8] sm:$0xff]
        %v282 = vld [vmem:[%s187 + $0x1c0] sm:$0xff]
        %v283 = vld [vmem:[%s187 + $0x1c8] sm:$0xff]
        %v284 = vld [vmem:[%s187 + $0x1d0] sm:$0xff]
        %v285 = vld [vmem:[%s187 + $0x1d8] sm:$0xff]
        %v286 = vld [vmem:[%s187 + $0x1e0] sm:$0xff]
        %v287 = vld [vmem:[%s187 + $0x1e8] sm:$0xff]
        %v288 = vld [vmem:[%s187 + $0x1f0] sm:$0xff]
        %v289 = vld [vmem:[%s187 + $0x1f8] sm:$0xff]
        %v290 = vand.u32 %v225, 1
        %vm291 = vcmp.ne.s32.totalorder %v290, 0
        %v292 = vsel %vm291, 1, 0
        %v293 = vlaneseq
        %v294 = vshrl.u32 %v293, 7
        %v295 = vsub.s32 0, %v294
        %v296 = vrot.slane %v292, %v295
        %v297 = vlaneseq
        %v298 = vshrl.u32 %v297, 7
        %v299 = vsub.s32 1, %v298
        %v300 = vrot.slane %v292, %v299
        %vm301 = vcmp.eq.s32.totalorder %v296, 1
        %vm302 = vcmp.eq.s32.totalorder %v300, 1
        %v303 = vsel %vm301, %v234, %v226
        %v304 = vsel %vm302, %v235, %v227
        %v305 = vsel %vm301, %v236, %v228
        %v306 = vsel %vm302, %v237, %v229
        %v307 = vsel %vm301, %v238, %v230
        %v308 = vsel %vm302, %v239, %v231
        %v309 = vsel %vm301, %v240, %v232
        %v310 = vsel %vm302, %v241, %v233
        %v311 = vsel %vm301, %v250, %v242
        %v312 = vsel %vm302, %v251, %v243
        %v313 = vsel %vm301, %v252, %v244
        %v314 = vsel %vm302, %v253, %v245
        %v315 = vsel %vm301, %v254, %v246
        %v316 = vsel %vm302, %v255, %v247
        %v317 = vsel %vm301, %v256, %v248
        %v318 = vsel %vm302, %v257, %v249
        %v319 = vsel %vm301, %v266, %v258
        %v320 = vsel %vm302, %v267, %v259
        %v321 = vsel %vm301, %v268, %v260
        %v322 = vsel %vm302, %v269, %v261
        %v323 = vsel %vm301, %v270, %v262
        %v324 = vsel %vm302, %v271, %v263
        %v325 = vsel %vm301, %v272, %v264
        %v326 = vsel %vm302, %v273, %v265
        %v327 = vsel %vm301, %v282, %v274
        %v328 = vsel %vm302, %v283, %v275
        %v329 = vsel %vm301, %v284, %v276
        %v330 = vsel %vm302, %v285, %v277
        %v331 = vsel %vm301, %v286, %v278
        %v332 = vsel %vm302, %v287, %v279
        %v333 = vsel %vm301, %v288, %v280
        %v334 = vsel %vm302, %v289, %v281
        %v335 = vand.u32 %v225, 2
        %vm336 = vcmp.ne.s32.totalorder %v335, 0
        %v337 = vsel %vm336, 1, 0
        %v338 = vlaneseq
        %v339 = vshrl.u32 %v338, 7
        %v340 = vsub.s32 0, %v339
        %v341 = vrot.slane %v337, %v340
        %v342 = vlaneseq
        %v343 = vshrl.u32 %v342, 7
        %v344 = vsub.s32 1, %v343
        %v345 = vrot.slane %v337, %v344
        %vm346 = vcmp.eq.s32.totalorder %v341, 1
        %vm347 = vcmp.eq.s32.totalorder %v345, 1
        %v348 = vsel %vm346, %v311, %v303
        %v349 = vsel %vm347, %v312, %v304
        %v350 = vsel %vm346, %v313, %v305
        %v351 = vsel %vm347, %v314, %v306
        %v352 = vsel %vm346, %v315, %v307
        %v353 = vsel %vm347, %v316, %v308
        %v354 = vsel %vm346, %v317, %v309
        %v355 = vsel %vm347, %v318, %v310
        %v356 = vsel %vm346, %v327, %v319
        %v357 = vsel %vm347, %v328, %v320
        %v358 = vsel %vm346, %v329, %v321
        %v359 = vsel %vm347, %v330, %v322
        %v360 = vsel %vm346, %v331, %v323
        %v361 = vsel %vm347, %v332, %v324
        %v362 = vsel %vm346, %v333, %v325
        %v363 = vsel %vm347, %v334, %v326
        %v364 = vand.u32 %v225, 4
        %vm365 = vcmp.ne.s32.totalorder %v364, 0
        %v366 = vsel %vm365, 1, 0
        %v367 = vlaneseq
        %v368 = vshrl.u32 %v367, 7
        %v369 = vsub.s32 0, %v368
        %v370 = vrot.slane %v366, %v369
        %v371 = vlaneseq
        %v372 = vshrl.u32 %v371, 7
        %v373 = vsub.s32 1, %v372
        %v374 = vrot.slane %v366, %v373
        %vm375 = vcmp.eq.s32.totalorder %v370, 1
        %vm376 = vcmp.eq.s32.totalorder %v374, 1
        %v377 = vsel %vm375, %v356, %v348
        %v378 = vsel %vm376, %v357, %v349
        %v379 = vsel %vm375, %v358, %v350
        %v380 = vsel %vm376, %v359, %v351
        %v381 = vsel %vm375, %v360, %v352
        %v382 = vsel %vm376, %v361, %v353
        %v383 = vsel %vm375, %v362, %v354
        %v384 = vsel %vm376, %v363, %v355
        %385 = vst [vmem:[%s221] sm:$0xff] %v377
        %386 = vst [vmem:[%s221 + $0x8] sm:$0xff] %v378
        %387 = vst [vmem:[%s221 + $0x10] sm:$0xff] %v379
        %388 = vst [vmem:[%s221 + $0x18] sm:$0xff] %v380
        %389 = vst [vmem:[%s221 + $0x20] sm:$0xff] %v381
        %390 = vst [vmem:[%s221 + $0x28] sm:$0xff] %v382
        %391 = vst [vmem:[%s221 + $0x30] sm:$0xff] %v383
        %392 = vst [vmem:[%s221 + $0x38] sm:$0xff] %v384
        %s393 = sand.u32 %s100, 1
        %s394 = scalar_lea.sflag [#allocation4], %s393
        %s395 = sand.u32 %s100, 1
        %s396 = smul.addr %s395, 64
        %s397 = scalar_lea.vmem [#allocation7], %s396
        // Predicated region
        $region37: #{tpu_custom_call.1} parent=27 // pred_check
          %p398 = pneg %p110
        $region38: #{tpu_custom_call.1} parent=27 // pred_check_branch
          %400 = sbr.rel (%p398) target = $region40
        $region39: #{tpu_custom_call.1} parent=27 // pred_region
          %s401 = smul.u32 2, %s27
          %s403 = ssub.s32 1024, 1024
          %404 = vsyncadd %s394, %s403
          %s405 = smul.addr %s26, 8
          %s406 = sadd.s32 %s401, %s405
          %s407 = smul.addr %s406, 128
          %s408 = scalar_lea.hbm %s2, %s407
          %s409 = sshll.u32 %s397, 4
          %s410 = int_to_ptr.vmem [resolvable:$true] %s409
          %415 = dma.vmem_to_hbm [thread:$0]  %s410, 1024, %s408, %s394, 256, 256, 16
        $region40: #{tpu_custom_call.1} parent=27 // pred_fallthru
          _
      $region28: #{tpu_custom_call.1} parent=5 // pred_fallthru
        _
      %p416 = scmp.le.s32.totalorder 2, %s17
      // Predicated region
      $region41: #{tpu_custom_call.1} parent=5 // pred_check
        %p417 = pneg %p416
      $region42: #{tpu_custom_call.1} parent=5 // pred_check_branch
        %419 = sbr.rel (%p417) target = $region44
      $region43: #{tpu_custom_call.1} parent=5 // pred_region
        %s420 = ssub.s32 %s17, 2
        // Predicated region
        $region45: #{tpu_custom_call.1} parent=43 // pred_check
          %p421 = pneg %p116
        $region46: #{tpu_custom_call.1} parent=43 // pred_check_branch
          %423 = sbr.rel (%p421) target = $region48
        $region47: #{tpu_custom_call.1} parent=43 // pred_region
          %s424 = sand.u32 %s101, 1
          %s425 = scalar_lea.sflag [#allocation4], %s424
          %s426 = sand.u32 %s101, 1
          %s427 = smul.addr %s426, 64
          %s428 = scalar_lea.vmem [#allocation7], %s427
          %429 = dma.done %s425, 1024
        $region48: #{tpu_custom_call.1} parent=43 // pred_fallthru
          _
      $region44: #{tpu_custom_call.1} parent=5 // pred_fallthru
        _
    $region6: #{tpu_custom_call.1} parent=1 // loop_footer
      %s21 = sadd.s32 1, %s17
    $region7: #{tpu_custom_call.1} parent=1 // loop_footer_branch
      %16 = sbr.rel target = $region3
    $region8: #{tpu_custom_call.1} parent=1 // loop_exit
      _
    %430 = vsyncpa [#allocation3], 1
    %s431 = scalar_lea.sflag [#allocation3], 1
    %432 = vsyncpa %s431, 1
    %433 = vsyncpa [#allocation6], 1
    %s434 = scalar_lea.sflag [#allocation6], 1
    %435 = vsyncpa %s434, 1
    %436 = vsyncpa [#allocation4], 1
    %s437 = scalar_lea.sflag [#allocation4], 1
    %438 = vsyncpa %s437, 1

</llo_original>
